<compile_context>
chip_gen: v5e
topology: v5e:2x2
jax: 0.10.0
libtpu: 0.0.40
codegen_flags: <defaults>
</compile_context>

<pallas_src>
import functools

import jax
import jax.numpy as jnp
from jax.experimental import pallas as pl
from jax.experimental.pallas import tpu as pltpu


def _round_up(n: int, m: int) -> int:
    return ((n + m - 1) // m) * m


# Largest single batch tile.  Keeps the double-buffered x / output tiles plus
# in-kernel f32 intermediates well under the 48 MiB scoped-VMEM limit we set
# (and under v7x's 64 MiB physical VMEM).
_MAX_TB = 4096


# ---------------------------------------------------------------------------
# Kernel: one batch tile (tb rows) through the whole MLP.
# Weights stay resident in VMEM across grid steps (constant index_maps).
# ---------------------------------------------------------------------------
def dqn_mlp_kernel(x_ref, w1_ref, b1_ref, w2_ref, b2_ref, w3_ref, b3_ref,
                   o_ref, *, action_dim: int):
    # Layer 1: Linear + ReLU   (bf16 operands, f32 accumulation on the MXU)
    xb = x_ref[...].astype(jnp.bfloat16)
    h1 = jnp.dot(xb, w1_ref[...], preferred_element_type=jnp.float32)
    h1 = jnp.maximum(h1 + b1_ref[...], 0.0)

    # Layer 2: Linear + ReLU
    h2 = jnp.dot(h1.astype(jnp.bfloat16), w2_ref[...],
                 preferred_element_type=jnp.float32)
    h2 = jnp.maximum(h2 + b2_ref[...], 0.0)

    # Output head: Linear (Q-values, no activation).  Matmul runs on the
    # lane-padded w3, but only the real action lanes are written back to HBM.
    q = jnp.dot(h2.astype(jnp.bfloat16), w3_ref[...],
                preferred_element_type=jnp.float32)
    q = q + b3_ref[...]
    o_ref[...] = q[:, :action_dim].astype(o_ref.dtype)


# ---------------------------------------------------------------------------
# Parameter prep (done once): pad sub-tile dims, cast weights to bf16.
# ---------------------------------------------------------------------------
def prepare_params(params, state_dim: int, action_dim: int):
    s_pad = _round_up(state_dim, 8)       # K of layer-1 padded to a sublane tile
    a_pad = _round_up(action_dim, 128)    # head kept lane-wide for the MXU only

    w1 = jnp.pad(params["w1"], ((0, s_pad - state_dim), (0, 0))).astype(jnp.bfloat16)
    b1 = params["b1"].astype(jnp.float32)
    w2 = params["w2"].astype(jnp.bfloat16)
    b2 = params["b2"].astype(jnp.float32)
    w3 = jnp.pad(params["w3"], ((0, 0), (0, a_pad - action_dim))).astype(jnp.bfloat16)
    b3 = jnp.pad(params["b3"], ((0, 0), (0, a_pad - action_dim))).astype(jnp.float32)
    return {"w1": w1, "b1": b1, "w2": w2, "b2": b2, "w3": w3, "b3": b3}


# ---------------------------------------------------------------------------
# Jitted forward wrapper.
# ---------------------------------------------------------------------------
@functools.partial(jax.jit, static_argnames=("action_dim",))
def dqn_forward(x, prepped, *, action_dim: int):
    """Fused forward pass of DQNNetwork via one pallas_call.

    x: (B, state_dim) float32
    prepped: dict from prepare_params (bf16 padded weights, f32 biases)
    returns: (B, action_dim) float32 Q-values
    """
    w1, b1 = prepped["w1"], prepped["b1"]
    w2, b2 = prepped["w2"], prepped["b2"]
    w3, b3 = prepped["w3"], prepped["b3"]

    B, S = x.shape
    s_pad = w1.shape[0]
    h1 = w1.shape[1]
    h2 = w2.shape[1]
    a_pad = w3.shape[1]

    # Tile selection: one big tile for typical DQN batches; only very large
    # batches split, and then into an EVEN number of grid steps so v7x's two
    # TensorCores each get work via the "parallel" batch axis.
    b8 = _round_up(B, 8)
    if b8 <= _MAX_TB:
        num_tiles = 1
    else:
        num_tiles = pl.cdiv(b8, _MAX_TB)
        if num_tiles % 2:
            num_tiles += 1
    tb = _round_up(pl.cdiv(b8, num_tiles), 8)
    b_pad = num_tiles * tb

    # Skip the pad entirely when the input is already aligned.
    if b_pad != B or s_pad != S:
        x_in = jnp.pad(x, ((0, b_pad - B), (0, s_pad - S)))
    else:
        x_in = x

    # Weights/biases: constant index_map -> loaded once, resident across steps.
    pinned = lambda shape: pl.BlockSpec(shape, lambda i: (0, 0))

    flops = 2 * b_pad * (s_pad * h1 + h1 * h2 + h2 * a_pad)
    bytes_accessed = (
        b_pad * s_pad * 4                              # x in
        + b_pad * action_dim * 4                       # q out (narrow!)
        + (s_pad * h1 + h1 * h2 + h2 * a_pad) * 2      # bf16 weights
        + (h1 + h2 + a_pad) * 4                        # f32 biases
    )

    out = pl.pallas_call(
        functools.partial(dqn_mlp_kernel, action_dim=action_dim),
        out_shape=jax.ShapeDtypeStruct((b_pad, action_dim), jnp.float32),
        grid=(num_tiles,),
        in_specs=[
            pl.BlockSpec((tb, s_pad), lambda i: (i, 0)),   # x: streamed per tile
            pinned((s_pad, h1)), pinned((1, h1)),
            pinned((h1, h2)), pinned((1, h2)),
            pinned((h2, a_pad)), pinned((1, a_pad)),
        ],
        # Narrow output: last block dim == full array dim (legal), so only the
        # real Q-value lanes hit HBM.
        out_specs=pl.BlockSpec((tb, action_dim), lambda i: (i, 0)),
        compiler_params=pltpu.CompilerParams(
            dimension_semantics=("parallel",),             # shard batch over TCs
            vmem_limit_bytes=48 * 1024 * 1024),            # large tiles OK on v5e too
        cost_estimate=pl.CostEstimate(
            flops=flops, transcendentals=0, bytes_accessed=bytes_accessed),
    )(x_in, w1, b1, w2, b2, w3, b3)

    if b_pad != B:
        out = out[:B]
    return out


def init_params(key, state_dim, action_dim, hidden_dims):
    """Deterministic init mimicking PyTorch nn.Linear default (uniform +/-1/sqrt(fan_in))."""
    dims = [state_dim] + list(hidden_dims) + [action_dim]
    params = {}
    keys = jax.random.split(key, 2 * (len(dims) - 1))
    for i in range(len(dims) - 1):
        fan_in, fan_out = dims[i], dims[i + 1]
        bound = 1.0 / jnp.sqrt(jnp.float32(fan_in))
        w = jax.random.uniform(keys[2 * i], (fan_in, fan_out),
                               minval=-bound, maxval=bound, dtype=jnp.float32)
        b = jax.random.uniform(keys[2 * i + 1], (1, fan_out),
                               minval=-bound, maxval=bound, dtype=jnp.float32)
        params[f"w{i + 1}"] = w
        params[f"b{i + 1}"] = b
    return params


if __name__ == "__main__":
    # CartPole-ish sizes: state_dim=4, action_dim=2, hidden_dims=[128, 128]
    state_dim, action_dim = 4, 2
    hidden_dims = [128, 128]
    batch = 8

    key = jax.random.PRNGKey(0)
    k_params, k_x = jax.random.split(key)
    params = init_params(k_params, state_dim, action_dim, hidden_dims)
    prepped = prepare_params(params, state_dim, action_dim)
    x = jax.random.normal(k_x, (batch, state_dim), dtype=jnp.float32)

    q_kernel = dqn_forward(x, prepped, action_dim=action_dim)
    q_kernel = jax.block_until_ready(q_kernel)
    assert q_kernel.shape == (batch, action_dim)

    # Reference 1: mirrors kernel numerics (bf16 weights/activations, f32 accum)
    f32 = lambda a: a.astype(jnp.float32)
    w1b = f32(params["w1"].astype(jnp.bfloat16))
    w2b = f32(params["w2"].astype(jnp.bfloat16))
    w3b = f32(params["w3"].astype(jnp.bfloat16))
    xb = f32(x.astype(jnp.bfloat16))
    h = jnp.maximum(xb @ w1b + params["b1"], 0.0)
    h = jnp.maximum(f32(h.astype(jnp.bfloat16)) @ w2b + params["b2"], 0.0)
    q_ref_bf16 = f32(h.astype(jnp.bfloat16)) @ w3b + params["b3"]
    assert jnp.allclose(q_kernel, q_ref_bf16, atol=1e-3, rtol=1e-3)

    # Reference 2: full-f32 semantics of the original module (loose tolerance
    # because kernel uses bf16 weights)
    h = jnp.maximum(x @ params["w1"] + params["b1"], 0.0)
    h = jnp.maximum(h @ params["w2"] + params["b2"], 0.0)
    q_ref_f32 = h @ params["w3"] + params["b3"]
    assert jnp.allclose(q_kernel, q_ref_f32, atol=5e-2, rtol=5e-2)

    print("KERNEL_OK")
</pallas_src>

<mosaic_0001>
module attributes {stable_mosaic.version = 11 : i64} {
  func.func @dqn_mlp_kernel(%arg0: i32, %arg1: memref<8x8xf32, #tpu.memory_space<vmem>>, %arg2: memref<8x128xbf16, #tpu.memory_space<vmem>>, %arg3: memref<1x128xf32, #tpu.memory_space<vmem>>, %arg4: memref<128x128xbf16, #tpu.memory_space<vmem>>, %arg5: memref<1x128xf32, #tpu.memory_space<vmem>>, %arg6: memref<128x128xbf16, #tpu.memory_space<vmem>>, %arg7: memref<1x128xf32, #tpu.memory_space<vmem>>, %arg8: memref<8x2xf32, #tpu.memory_space<vmem>>) attributes {dimension_semantics = [#tpu.dimension_semantics<parallel>], iteration_bounds = array<i64: 1>, scalar_prefetch = 0 : i64, scratch_operands = 0 : i64, tpu.core_type = #tpu.core_type<tc>, window_params = [{transform_indices = @transform_0, window_bounds = array<i64: 8, 8>}, {pipeline_mode = #tpu.pipeline_mode<synchronous>, transform_indices = @transform_1, window_bounds = array<i64: 8, 128>}, {pipeline_mode = #tpu.pipeline_mode<synchronous>, transform_indices = @transform_2, window_bounds = array<i64: 1, 128>}, {pipeline_mode = #tpu.pipeline_mode<synchronous>, transform_indices = @transform_3, window_bounds = array<i64: 128, 128>}, {pipeline_mode = #tpu.pipeline_mode<synchronous>, transform_indices = @transform_4, window_bounds = array<i64: 1, 128>}, {pipeline_mode = #tpu.pipeline_mode<synchronous>, transform_indices = @transform_5, window_bounds = array<i64: 128, 128>}, {pipeline_mode = #tpu.pipeline_mode<synchronous>, transform_indices = @transform_6, window_bounds = array<i64: 1, 128>}, {transform_indices = @transform_7, window_bounds = array<i64: 8, 2>}]} {
    %c0 = arith.constant 0 : index
    %c0_0 = arith.constant 0 : index
    %0 = vector.load %arg1[%c0, %c0_0] : memref<8x8xf32, #tpu.memory_space<vmem>>, vector<8x8xf32>
    %1 = arith.truncf %0 : vector<8x8xf32> to vector<8x8xbf16>
    %c0_1 = arith.constant 0 : index
    %c0_2 = arith.constant 0 : index
    %2 = vector.load %arg2[%c0_1, %c0_2] : memref<8x128xbf16, #tpu.memory_space<vmem>>, vector<8x128xbf16>
    %cst = arith.constant dense<0.000000e+00> : vector<8x128xf32>
    %3 = tpu.matmul %1, %2, %cst {dimension_numbers = #tpu.dot_dimension_numbers<[1], [0], [0], [1], [0, 0, 1, 1], [], []>} : vector<8x8xbf16>, vector<8x128xbf16>, vector<8x128xf32> -> vector<8x128xf32>
    %c0_3 = arith.constant 0 : index
    %c0_4 = arith.constant 0 : index
    %4 = vector.load %arg3[%c0_3, %c0_4] : memref<1x128xf32, #tpu.memory_space<vmem>>, vector<1x128xf32>
    %5 = vector.broadcast %4 : vector<1x128xf32> to vector<8x128xf32>
    %6 = arith.addf %3, %5 : vector<8x128xf32>
    %cst_5 = arith.constant 0.000000e+00 : f32
    %7 = vector.broadcast %cst_5 : f32 to vector<8x128xf32>
    %8 = arith.maximumf %6, %7 : vector<8x128xf32>
    %9 = arith.truncf %8 : vector<8x128xf32> to vector<8x128xbf16>
    %c0_6 = arith.constant 0 : index
    %c0_7 = arith.constant 0 : index
    %10 = vector.load %arg4[%c0_6, %c0_7] : memref<128x128xbf16, #tpu.memory_space<vmem>>, vector<128x128xbf16>
    %cst_8 = arith.constant dense<0.000000e+00> : vector<8x128xf32>
    %11 = tpu.matmul %9, %10, %cst_8 {dimension_numbers = #tpu.dot_dimension_numbers<[1], [0], [0], [1], [0, 0, 1, 1], [], []>} : vector<8x128xbf16>, vector<128x128xbf16>, vector<8x128xf32> -> vector<8x128xf32>
    %c0_9 = arith.constant 0 : index
    %c0_10 = arith.constant 0 : index
    %12 = vector.load %arg5[%c0_9, %c0_10] : memref<1x128xf32, #tpu.memory_space<vmem>>, vector<1x128xf32>
    %13 = vector.broadcast %12 : vector<1x128xf32> to vector<8x128xf32>
    %14 = arith.addf %11, %13 : vector<8x128xf32>
    %cst_11 = arith.constant 0.000000e+00 : f32
    %15 = vector.broadcast %cst_11 : f32 to vector<8x128xf32>
    %16 = arith.maximumf %14, %15 : vector<8x128xf32>
    %17 = arith.truncf %16 : vector<8x128xf32> to vector<8x128xbf16>
    %c0_12 = arith.constant 0 : index
    %c0_13 = arith.constant 0 : index
    %18 = vector.load %arg6[%c0_12, %c0_13] : memref<128x128xbf16, #tpu.memory_space<vmem>>, vector<128x128xbf16>
    %cst_14 = arith.constant dense<0.000000e+00> : vector<8x128xf32>
    %19 = tpu.matmul %17, %18, %cst_14 {dimension_numbers = #tpu.dot_dimension_numbers<[1], [0], [0], [1], [0, 0, 1, 1], [], []>} : vector<8x128xbf16>, vector<128x128xbf16>, vector<8x128xf32> -> vector<8x128xf32>
    %c0_15 = arith.constant 0 : index
    %c0_16 = arith.constant 0 : index
    %20 = vector.load %arg7[%c0_15, %c0_16] : memref<1x128xf32, #tpu.memory_space<vmem>>, vector<1x128xf32>
    %21 = vector.broadcast %20 : vector<1x128xf32> to vector<8x128xf32>
    %22 = arith.addf %19, %21 : vector<8x128xf32>
    %23 = vector.extract_strided_slice %22 {offsets = [0, 0], sizes = [8, 2], strides = [1, 1]} : vector<8x128xf32> to vector<8x2xf32>
    %c0_17 = arith.constant 0 : index
    %c0_18 = arith.constant 0 : index
    %24 = vector.load %arg8[%c0_17, %c0_18] : memref<8x2xf32, #tpu.memory_space<vmem>>, vector<8x2xf32>
    tpu.vector_store %arg8[%c0_17, %c0_18], %23 {strides = array<i32>} : memref<8x2xf32, #tpu.memory_space<vmem>>, vector<8x2xf32>,
    return
  }
  func.func @transform_0(%arg0: i32) -> (i32, i32) {
    %c0_i32 = arith.constant 0 : i32
    %c0_i32_0 = arith.constant 0 : i32
    return %arg0, %c0_i32 : i32, i32
  }
  func.func @transform_1(%arg0: i32) -> (i32, i32) {
    %c0_i32 = arith.constant 0 : i32
    %c0_i32_0 = arith.constant 0 : i32
    %c0_i32_1 = arith.constant 0 : i32
    return %c0_i32, %c0_i32_0 : i32, i32
  }
  func.func @transform_2(%arg0: i32) -> (i32, i32) {
    %c0_i32 = arith.constant 0 : i32
    %c0_i32_0 = arith.constant 0 : i32
    %c0_i32_1 = arith.constant 0 : i32
    return %c0_i32, %c0_i32_0 : i32, i32
  }
  func.func @transform_3(%arg0: i32) -> (i32, i32) {
    %c0_i32 = arith.constant 0 : i32
    %c0_i32_0 = arith.constant 0 : i32
    %c0_i32_1 = arith.constant 0 : i32
    return %c0_i32, %c0_i32_0 : i32, i32
  }
  func.func @transform_4(%arg0: i32) -> (i32, i32) {
    %c0_i32 = arith.constant 0 : i32
    %c0_i32_0 = arith.constant 0 : i32
    %c0_i32_1 = arith.constant 0 : i32
    return %c0_i32, %c0_i32_0 : i32, i32
  }
  func.func @transform_5(%arg0: i32) -> (i32, i32) {
    %c0_i32 = arith.constant 0 : i32
    %c0_i32_0 = arith.constant 0 : i32
    %c0_i32_1 = arith.constant 0 : i32
    return %c0_i32, %c0_i32_0 : i32, i32
  }
  func.func @transform_6(%arg0: i32) -> (i32, i32) {
    %c0_i32 = arith.constant 0 : i32
    %c0_i32_0 = arith.constant 0 : i32
    %c0_i32_1 = arith.constant 0 : i32
    return %c0_i32, %c0_i32_0 : i32, i32
  }
  func.func @transform_7(%arg0: i32) -> (i32, i32) {
    %c0_i32 = arith.constant 0 : i32
    %c0_i32_0 = arith.constant 0 : i32
    return %arg0, %c0_i32 : i32, i32
  }
}

</mosaic_0001>

<llo_original>
// kernel: dqn_forward.1
$region0: #{dqn_forward.1}
  #allocation0 [shape = 'u32[]', space=smem, size = 0x4, offset = 0x4, fixed_abs, tag = 'smem constant byte address 0x4 - core index']
  #allocation1 [shape = 'u32[72,128]{1,0:T(1,128)}', space=vmem, size = 0x9000, scoped, tag = 'internal scratch']
  %s0 = inlined_call_operand.vmem [shape: f32[8,8], index: 0, kind: input, shape index: {}]
  %s1 = inlined_call_operand.vmem [shape: bf16[8,128], index: 1, kind: input, shape index: {}]
  %s2 = inlined_call_operand.vmem [shape: f32[1,128], index: 2, kind: input, shape index: {}]
  %s3 = inlined_call_operand.hbm [shape: bf16[128,128], index: 3, kind: input, shape index: {}]
  %s4 = inlined_call_operand.vmem [shape: f32[1,128], index: 4, kind: input, shape index: {}]
  %s5 = inlined_call_operand.hbm [shape: bf16[128,128], index: 5, kind: input, shape index: {}]
  %s6 = inlined_call_operand.vmem [shape: f32[1,128], index: 6, kind: input, shape index: {}]
  %s7 = inlined_call_operand.vmem [shape: f32[8,2], index: 7, kind: output, shape index: {}]
  %s8 = sld [smem:[#allocation0]]
  $region46: #{dqn_forward.1} parent=0
    _
  %s10 = ssub.s32 1, %s8
  %s11 = scalar_select 0, %s10, %s8
  $region1: #{dqn_forward.1} parent=0
    #allocation2 [shape = 'u8[32768]{0}', space=vmem, size = 0x8000, scoped, tag = 'input window, operand 3, single buffered']
    #allocation3 [shape = 's32[1]{0}', space=sflag, size = 0x4, scoped, tag = 'scoped memory for dqn_forward.1']
    #allocation4 [shape = 'u8[32768]{0}', space=vmem, size = 0x8000, scoped, tag = 'input window, operand 5, single buffered']
    #allocation5 [shape = 's32[1]{0}', space=sflag, size = 0x4, scoped, tag = 'scoped memory for dqn_forward.1']
    %12 = vsyncpa [#allocation3], 0
    %13 = vsyncpa [#allocation5], 0
    // Predicated region
    $region2: #{dqn_forward.1} parent=1 // pred_check
      _
    $region3: #{dqn_forward.1} parent=1 // pred_check_branch
      %15 = sbr.rel (0) target = $region5
    $region4: #{dqn_forward.1} parent=1 // pred_region
      _
    $region5: #{dqn_forward.1} parent=1 // pred_fallthru
      _
    // Predicated region
    $region6: #{dqn_forward.1} parent=1 // pred_check
      _
    $region7: #{dqn_forward.1} parent=1 // pred_check_branch
      %17 = sbr.rel (0) target = $region9
    $region8: #{dqn_forward.1} parent=1 // pred_region
      _
    $region9: #{dqn_forward.1} parent=1 // pred_fallthru
      _
    // Predicated region
    $region10: #{dqn_forward.1} parent=1 // pred_check
      _
    $region11: #{dqn_forward.1} parent=1 // pred_check_branch
      %19 = sbr.rel (0) target = $region13
    $region12: #{dqn_forward.1} parent=1 // pred_region
      _
    $region13: #{dqn_forward.1} parent=1 // pred_fallthru
      _
    // Predicated region
    $region14: #{dqn_forward.1} parent=1 // pred_check
      _
    $region15: #{dqn_forward.1} parent=1 // pred_check_branch
      %21 = sbr.rel (0) target = $region17
    $region16: #{dqn_forward.1} parent=1 // pred_region
      %23 = vsyncadd [#allocation3], 0
      %s24 = sshll.u32 %s3, 4
      %s25 = int_to_ptr.hbm [resolvable:$true] %s24
      %s26 = sshll.u32 [#allocation2], 4
      %s27 = int_to_ptr.vmem [resolvable:$true] %s26
      %32 = dma.hbm_to_vmem [thread:$0]  %s25, 1024, %s27, [#allocation3], 64, 64, 4
    $region17: #{dqn_forward.1} parent=1 // pred_fallthru
      _
    // Predicated region
    $region18: #{dqn_forward.1} parent=1 // pred_check
      _
    $region19: #{dqn_forward.1} parent=1 // pred_check_branch
      %34 = sbr.rel (0) target = $region21
    $region20: #{dqn_forward.1} parent=1 // pred_region
      _
    $region21: #{dqn_forward.1} parent=1 // pred_fallthru
      _
    // Predicated region
    $region22: #{dqn_forward.1} parent=1 // pred_check
      _
    $region23: #{dqn_forward.1} parent=1 // pred_check_branch
      %36 = sbr.rel (0) target = $region25
    $region24: #{dqn_forward.1} parent=1 // pred_region
      %38 = vsyncadd [#allocation5], 0
      %s39 = sshll.u32 %s5, 4
      %s40 = int_to_ptr.hbm [resolvable:$true] %s39
      %s41 = sshll.u32 [#allocation4], 4
      %s42 = int_to_ptr.vmem [resolvable:$true] %s41
      %47 = dma.hbm_to_vmem [thread:$0]  %s40, 1024, %s42, [#allocation5], 64, 64, 4
    $region25: #{dqn_forward.1} parent=1 // pred_fallthru
      _
    // Predicated region
    $region26: #{dqn_forward.1} parent=1 // pred_check
      _
    $region27: #{dqn_forward.1} parent=1 // pred_check_branch
      %49 = sbr.rel (0) target = $region29
    $region28: #{dqn_forward.1} parent=1 // pred_region
      _
    $region29: #{dqn_forward.1} parent=1 // pred_fallthru
      _
    // Predicated region
    $region30: #{dqn_forward.1} parent=1 // pred_check
      _
    $region31: #{dqn_forward.1} parent=1 // pred_check_branch
      %51 = sbr.rel (0) target = $region33
    $region32: #{dqn_forward.1} parent=1 // pred_region
      %53 = dma.done [#allocation3], 1024
    $region33: #{dqn_forward.1} parent=1 // pred_fallthru
      _
    // Predicated region
    $region34: #{dqn_forward.1} parent=1 // pred_check
      _
    $region35: #{dqn_forward.1} parent=1 // pred_check_branch
      %55 = sbr.rel (0) target = $region37
    $region36: #{dqn_forward.1} parent=1 // pred_region
      %57 = dma.done [#allocation5], 1024
    $region37: #{dqn_forward.1} parent=1 // pred_fallthru
      _
    %v59 = vld [vmem:[%s0] sm:$0xff]
    %v60 = vpack.c.bf16 %v59, %v59
    %v61 = vld [vmem:[%s1] sm:$0xf]
    %v62 = vld [vmem:[%s2] sm:$0x1]
    %v64 = vperm.slane %v62, 0
    %vm66 = vcmask 64512
    %v68 = vsel %vm66, %v60, 0
    %vm70 = vcmask 1043456
    %v72 = vsel %vm70, %v61, 0
    %74 = vmatpush.bf16.msra.mxu0 0
    %75 = vmatpush.bf16.msra.mxu0 0
    %76 = vmatpush.bf16.msra.mxu0 0
    %77 = vmatpush.bf16.msra.mxu0 0
    %78 = vmatpush.bf16.msra.mxu0 0
    %79 = vmatpush.bf16.msra.mxu0 0
    %80 = vmatpush.bf16.msra.mxu0 0
    %81 = vmatpush.bf16.msra.mxu0 %v72
    %82 = vmatmul.bf16.gmra.mxu0 %v68
    %v83 = vpop.f32.mrf.mxu0
    %v84 = vadd.f32 %v64, %v83
    %v85 = vpop.f32.mrf.mxu0
    %86 = vdwg.mxu0
    %v87 = vmax.f32 %v84, 0.0
    %v88 = vpack.c.bf16 %v87, %v87
    %v89 = vld [vmem:[#allocation2] sm:$0xf]
    %v90 = vld [vmem:[#allocation2 + $0x4] sm:$0xf]
    %v91 = vld [vmem:[#allocation2 + $0x8] sm:$0xf]
    %v92 = vld [vmem:[#allocation2 + $0xc] sm:$0xf]
    %v93 = vld [vmem:[#allocation2 + $0x10] sm:$0xf]
    %v94 = vld [vmem:[#allocation2 + $0x14] sm:$0xf]
    %v95 = vld [vmem:[#allocation2 + $0x18] sm:$0xf]
    %v96 = vld [vmem:[#allocation2 + $0x1c] sm:$0xf]
    %v97 = vld [vmem:[#allocation2 + $0x20] sm:$0xf]
    %v98 = vld [vmem:[#allocation2 + $0x24] sm:$0xf]
    %v99 = vld [vmem:[#allocation2 + $0x28] sm:$0xf]
    %v100 = vld [vmem:[#allocation2 + $0x2c] sm:$0xf]
    %v101 = vld [vmem:[#allocation2 + $0x30] sm:$0xf]
    %v102 = vld [vmem:[#allocation2 + $0x34] sm:$0xf]
    %v103 = vld [vmem:[#allocation2 + $0x38] sm:$0xf]
    %v104 = vld [vmem:[#allocation2 + $0x3c] sm:$0xf]
    %v105 = vld [vmem:[%s4] sm:$0x1]
    %v107 = vperm.slane %v105, 0
    %v125 = vunpack.c.l.b16 %v89
    %v126 = vunpack.c.l.b16 %v90
    %v127 = vunpack.c.l.b16 %v91
    %v128 = vunpack.c.l.b16 %v92
    %v129 = vunpack.c.l.b16 %v93
    %v130 = vunpack.c.l.b16 %v94
    %v131 = vunpack.c.l.b16 %v95
    %v132 = vunpack.c.l.b16 %v96
    %v133 = vunpack.c.l.b16 %v97
    %v134 = vunpack.c.l.b16 %v98
    %v135 = vunpack.c.l.b16 %v99
    %v136 = vunpack.c.l.b16 %v100
    %v137 = vunpack.c.l.b16 %v101
    %v138 = vunpack.c.l.b16 %v102
    %v139 = vunpack.c.l.b16 %v103
    %v140 = vunpack.c.l.b16 %v104
    %v141 = vpack.c.b16 %v126, %v125
    %v142 = vpack.c.b16 %v128, %v127
    %v143 = vpack.c.b16 %v130, %v129
    %v144 = vpack.c.b16 %v132, %v131
    %v145 = vpack.c.b16 %v134, %v133
    %v146 = vpack.c.b16 %v136, %v135
    %v147 = vpack.c.b16 %v138, %v137
    %v148 = vpack.c.b16 %v140, %v139
    %157 = vmatpush.bf16.msra.mxu0 %v148
    %158 = vmatpush.bf16.msra.mxu0 %v147
    %159 = vmatpush.bf16.msra.mxu0 %v146
    %160 = vmatpush.bf16.msra.mxu0 %v145
    %161 = vmatpush.bf16.msra.mxu0 %v144
    %162 = vmatpush.bf16.msra.mxu0 %v143
    %163 = vmatpush.bf16.msra.mxu0 %v142
    %164 = vmatpush.bf16.msra.mxu0 %v141
    %165 = vmatmul.bf16.gmra.mxu0 %v88
    %v166 = vpop.f32.mrf.mxu0
    %v167 = vadd.f32 %v107, %v166
    %v168 = vpop.f32.mrf.mxu0
    %169 = vdwg.mxu0
    %v170 = vmax.f32 %v167, 0.0
    %v171 = vpack.c.bf16 %v170, %v170
    %v172 = vld [vmem:[#allocation4] sm:$0xf]
    %v173 = vld [vmem:[#allocation4 + $0x4] sm:$0xf]
    %v174 = vld [vmem:[#allocation4 + $0x8] sm:$0xf]
    %v175 = vld [vmem:[#allocation4 + $0xc] sm:$0xf]
    %v176 = vld [vmem:[#allocation4 + $0x10] sm:$0xf]
    %v177 = vld [vmem:[#allocation4 + $0x14] sm:$0xf]
    %v178 = vld [vmem:[#allocation4 + $0x18] sm:$0xf]
    %v179 = vld [vmem:[#allocation4 + $0x1c] sm:$0xf]
    %v180 = vld [vmem:[#allocation4 + $0x20] sm:$0xf]
    %v181 = vld [vmem:[#allocation4 + $0x24] sm:$0xf]
    %v182 = vld [vmem:[#allocation4 + $0x28] sm:$0xf]
    %v183 = vld [vmem:[#allocation4 + $0x2c] sm:$0xf]
    %v184 = vld [vmem:[#allocation4 + $0x30] sm:$0xf]
    %v185 = vld [vmem:[#allocation4 + $0x34] sm:$0xf]
    %v186 = vld [vmem:[#allocation4 + $0x38] sm:$0xf]
    %v187 = vld [vmem:[#allocation4 + $0x3c] sm:$0xf]
    %v188 = vld [vmem:[%s6] sm:$0x1]
    %v190 = vperm.slane %v188, 0
    %v208 = vunpack.c.l.b16 %v172
    %v209 = vunpack.c.l.b16 %v173
    %v210 = vunpack.c.l.b16 %v174
    %v211 = vunpack.c.l.b16 %v175
    %v212 = vunpack.c.l.b16 %v176
    %v213 = vunpack.c.l.b16 %v177
    %v214 = vunpack.c.l.b16 %v178
    %v215 = vunpack.c.l.b16 %v179
    %v216 = vunpack.c.l.b16 %v180
    %v217 = vunpack.c.l.b16 %v181
    %v218 = vunpack.c.l.b16 %v182
    %v219 = vunpack.c.l.b16 %v183
    %v220 = vunpack.c.l.b16 %v184
    %v221 = vunpack.c.l.b16 %v185
    %v222 = vunpack.c.l.b16 %v186
    %v223 = vunpack.c.l.b16 %v187
    %v224 = vpack.c.b16 %v209, %v208
    %v225 = vpack.c.b16 %v211, %v210
    %v226 = vpack.c.b16 %v213, %v212
    %v227 = vpack.c.b16 %v215, %v214
    %v228 = vpack.c.b16 %v217, %v216
    %v229 = vpack.c.b16 %v219, %v218
    %v230 = vpack.c.b16 %v221, %v220
    %v231 = vpack.c.b16 %v223, %v222
    %240 = vmatpush.bf16.msra.mxu0 %v231
    %241 = vmatpush.bf16.msra.mxu0 %v230
    %242 = vmatpush.bf16.msra.mxu0 %v229
    %243 = vmatpush.bf16.msra.mxu0 %v228
    %244 = vmatpush.bf16.msra.mxu0 %v227
    %245 = vmatpush.bf16.msra.mxu0 %v226
    %246 = vmatpush.bf16.msra.mxu0 %v225
    %247 = vmatpush.bf16.msra.mxu0 %v224
    %248 = vmatmul.bf16.gmra.mxu0 %v171
    %v249 = vpop.f32.mrf.mxu0
    %v250 = vadd.f32 %v190, %v249
    %v251 = vpop.f32.mrf.mxu0
    %252 = vdwg.mxu0
    %vm253 = vcmask 15360
    %254 = vst.msk [vmem:[%s7] sm:$0xff] %vm253, %v250
    // Predicated region
    $region38: #{dqn_forward.1} parent=1 // pred_check
      _
    $region39: #{dqn_forward.1} parent=1 // pred_check_branch
      %256 = sbr.rel (0) target = $region41
    $region40: #{dqn_forward.1} parent=1 // pred_region
      _
    $region41: #{dqn_forward.1} parent=1 // pred_fallthru
      _
    // Predicated region
    $region42: #{dqn_forward.1} parent=1 // pred_check
      _
    $region43: #{dqn_forward.1} parent=1 // pred_check_branch
      %258 = sbr.rel (0) target = $region45
    $region44: #{dqn_forward.1} parent=1 // pred_region
      _
    $region45: #{dqn_forward.1} parent=1 // pred_fallthru
      _
    %259 = vsyncpa [#allocation3], 1
    %260 = vsyncpa [#allocation5], 1

</llo_original>
